<compile_context>
chip_gen: v5e
topology: v5e:2x2
jax: 0.10.0
libtpu: 0.0.40
codegen_flags: <defaults>
</compile_context>

<pallas_src>
import functools

import jax
import jax.numpy as jnp
from jax import lax
from jax.experimental import pallas as pl
from jax.experimental.pallas import tpu as pltpu


def _gae_kernel(r_ref, v_ref, m_ref, out_ref, delta_ref, coeff_ref, *, gamma, lambd):
    """Backward recurrence:
        delta_t = r_t + gamma * m_t * V_{t+1} - V_t
        A_t     = delta_t + gamma * lambd * m_t * A_{t+1}

    r_ref/m_ref/out_ref: (T, bb) f32 VMEM; v_ref: (T+1, bb) f32 VMEM.
    delta_ref/coeff_ref: (T, bb) f32 VMEM scratch.
    T is a multiple of 8, bb a multiple of 128.
    """
    T = r_ref.shape[0]
    bb = r_ref.shape[1]
    n_chunks = T // 8
    gl = gamma * lambd

    # ---- dense precompute: no serial dependence, full-vreg vector work ----
    m = m_ref[...]
    v_t = v_ref[pl.ds(0, T), :]
    v_tp1 = v_ref[pl.ds(1, T), :]
    delta_ref[...] = r_ref[...] + (gamma * m) * v_tp1 - v_t
    coeff_ref[...] = gl * m

    # ---- backward scan over time, 8 rows at a time ----
    def chunk_body(c, adv):
        t0 = pl.multiple_of((n_chunks - 1 - c) * 8, 8)
        d = delta_ref[pl.ds(t0, 8), :]   # aligned (8, bb) full-vreg load
        w = coeff_ref[pl.ds(t0, 8), :]
        rows = [None] * 8
        for j in range(7, -1, -1):       # 8 unrolled steps kept in registers
            adv = d[j:j + 1, :] + w[j:j + 1, :] * adv
            rows[j] = adv
        out_ref[pl.ds(t0, 8), :] = jnp.concatenate(rows, axis=0)  # dense store
        return adv

    init = jnp.zeros((1, bb), jnp.float32)
    lax.fori_loop(0, n_chunks, chunk_body, init)


def _gae_pallas_2d(rewards, values, masks, gamma, lambd, *, block_b_max=512):
    """rewards/masks: (T, B) f32, values: (T+1, B) f32. Returns (T, B) f32."""
    T, B = rewards.shape

    # Pad time to a multiple of 8 *at the front*: the backward scan processes
    # the (higher-index) real steps first, so padding rows never influence
    # real outputs and are simply sliced off afterwards.
    T_pad = ((T + 7) // 8) * 8
    pad_t = T_pad - T

    # Batch tile: multiple of 128, at most block_b_max, no bigger than needed.
    B128 = ((B + 127) // 128) * 128
    block_b = min(int(block_b_max), B128)
    block_b = ((block_b + 127) // 128) * 128
    B_pad = ((B128 + block_b - 1) // block_b) * block_b
    pad_b = B_pad - B

    if pad_t or pad_b:
        rewards = jnp.pad(rewards, ((pad_t, 0), (0, pad_b)))
        values = jnp.pad(values, ((pad_t, 0), (0, pad_b)))
        masks = jnp.pad(masks, ((pad_t, 0), (0, pad_b)))  # zero mask in padding

    grid = (B_pad // block_b,)
    kernel = functools.partial(_gae_kernel, gamma=float(gamma), lambd=float(lambd))

    out = pl.pallas_call(
        kernel,
        out_shape=jax.ShapeDtypeStruct((T_pad, B_pad), jnp.float32),
        grid_spec=pltpu.PrefetchScalarGridSpec(
            num_scalar_prefetch=0,
            grid=grid,
            in_specs=[
                pl.BlockSpec((T_pad, block_b), lambda i: (0, i)),
                pl.BlockSpec((T_pad + 1, block_b), lambda i: (0, i)),
                pl.BlockSpec((T_pad, block_b), lambda i: (0, i)),
            ],
            out_specs=pl.BlockSpec((T_pad, block_b), lambda i: (0, i)),
            scratch_shapes=[
                pltpu.VMEM((T_pad, block_b), jnp.float32),  # delta
                pltpu.VMEM((T_pad, block_b), jnp.float32),  # coeff
            ],
        ),
        compiler_params=pltpu.CompilerParams(
            dimension_semantics=("parallel",),
        ),
    )(rewards, values, masks)

    return out[pad_t:, :B]


def generalized_advantage_estimate(rewards, values, discount_factor, lambd,
                                   masks=None, time_axis=0):
    """JAX/Pallas equivalent of the PyTorch generalized_advantage_estimate."""
    rewards = jnp.asarray(rewards, jnp.float32)
    values = jnp.asarray(values, jnp.float32)
    if masks is None:
        masks = jnp.ones_like(rewards)
    else:
        masks = jnp.asarray(masks, jnp.float32)

    if time_axis != 0:
        rewards = jnp.swapaxes(rewards, 0, time_axis)
        values = jnp.swapaxes(values, 0, time_axis)
        masks = jnp.swapaxes(masks, 0, time_axis)

    if rewards.shape[1:] != values.shape[1:]:
        raise ValueError(
            f"Rewards of shape {rewards.shape}, but values of shape {values.shape}. "
            "Expect non-time dimension to match.")
    if rewards.shape[0] + 1 != values.shape[0]:
        raise ValueError(
            f"Time dimension of rewards is of length {rewards.shape[0]}, and time "
            f"dimension of values is of length {values.shape[0]}. Expect values to "
            "be exactly 1 longer than rewards.")

    T = rewards.shape[0]
    batch_shape = rewards.shape[1:]
    B = 1
    for d in batch_shape:
        B *= d

    r2 = rewards.reshape(T, B)
    v2 = values.reshape(T + 1, B)
    m2 = masks.reshape(T, B)

    adv2 = _gae_pallas_2d(r2, v2, m2, discount_factor, lambd)
    advantages = adv2.reshape((T,) + batch_shape)

    if time_axis != 0:
        advantages = jnp.swapaxes(advantages, time_axis, 0)
    return advantages


class GeneralizedAdvantageEstimate:
    """JAX/Pallas port of the PyTorch GeneralizedAdvantageEstimate module."""

    def __init__(self, discount_factor, lambd):
        assert 0.0 < discount_factor <= 1.0
        assert 0.0 <= lambd <= 1.0
        self.discount_factor = float(discount_factor)
        self.lambd = float(lambd)

    def __call__(self, rewards, values, masks=None, time_axis=0):
        return generalized_advantage_estimate(
            rewards, values,
            discount_factor=self.discount_factor,
            lambd=self.lambd,
            masks=masks,
            time_axis=time_axis,
        )


def _reference_gae(rewards, values, gamma, lambd, masks):
    """Pure-JAX reference (same semantics as the PyTorch loop)."""
    T = rewards.shape[0]
    adv = jnp.zeros(rewards.shape[1:], jnp.float32)
    out = []
    for t in reversed(range(T)):
        delta = rewards[t] + values[t + 1] * gamma * masks[t] - values[t]
        adv = delta + adv * gamma * lambd * masks[t]
        out.append(adv)
    return jnp.stack(out[::-1], axis=0)


if __name__ == "__main__":
    key = jax.random.PRNGKey(0)
    k1, k2, k3 = jax.random.split(key, 3)

    # Matches the module's docstring example scale: rewards (10, 4), values (11, 4).
    T, B = 10, 4
    rewards = jax.random.normal(k1, (T, B), jnp.float32)
    values = jax.random.normal(k2, (T + 1, B), jnp.float32)
    masks = (jax.random.uniform(k3, (T, B)) > 0.2).astype(jnp.float32)

    gae_fn = GeneralizedAdvantageEstimate(discount_factor=0.99, lambd=0.9)

    out = jax.block_until_ready(gae_fn(rewards, values, masks=masks, time_axis=0))
    ref = _reference_gae(rewards, values, 0.99, 0.9, masks)
    assert out.shape == (T, B)
    assert jnp.allclose(out, ref, atol=1e-5, rtol=1e-5)

    # Also exercise the no-mask and time_axis != 0 paths.
    out2 = jax.block_until_ready(
        gae_fn(jnp.swapaxes(rewards, 0, 1), jnp.swapaxes(values, 0, 1),
               masks=None, time_axis=1))
    ref2 = _reference_gae(rewards, values, 0.99, 0.9, jnp.ones_like(rewards))
    assert out2.shape == (B, T)
    assert jnp.allclose(jnp.swapaxes(out2, 0, 1), ref2, atol=1e-5, rtol=1e-5)

    print("KERNEL_OK")
</pallas_src>

<mosaic_0001>
module attributes {stable_mosaic.version = 11 : i64} {
  func.func @_gae_kernel(%arg0: i32, %arg1: memref<16x128xf32, #tpu.memory_space<vmem>>, %arg2: memref<17x128xf32, #tpu.memory_space<vmem>>, %arg3: memref<16x128xf32, #tpu.memory_space<vmem>>, %arg4: memref<16x128xf32, #tpu.memory_space<vmem>>, %arg5: memref<16x128xf32, #tpu.memory_space<vmem>>, %arg6: memref<16x128xf32, #tpu.memory_space<vmem>>) attributes {dimension_semantics = [#tpu.dimension_semantics<parallel>], iteration_bounds = array<i64: 1>, scalar_prefetch = 0 : i64, scratch_operands = 2 : i64, tpu.core_type = #tpu.core_type<tc>, window_params = [{transform_indices = @transform_0, window_bounds = array<i64: 16, 128>}, {transform_indices = @transform_1, window_bounds = array<i64: 17, 128>}, {transform_indices = @transform_2, window_bounds = array<i64: 16, 128>}, {transform_indices = @transform_3, window_bounds = array<i64: 16, 128>}]} {
    %c0 = arith.constant 0 : index
    %c0_0 = arith.constant 0 : index
    %0 = vector.load %arg3[%c0, %c0_0] : memref<16x128xf32, #tpu.memory_space<vmem>>, vector<16x128xf32>
    %c0_1 = arith.constant 0 : index
    %c0_2 = arith.constant 0 : index
    %1 = vector.load %arg2[%c0_1, %c0_2] : memref<17x128xf32, #tpu.memory_space<vmem>>, vector<16x128xf32>
    %c1 = arith.constant 1 : index
    %c0_3 = arith.constant 0 : index
    %2 = vector.load %arg2[%c1, %c0_3] : memref<17x128xf32, #tpu.memory_space<vmem>>, vector<16x128xf32>
    %c0_4 = arith.constant 0 : index
    %c0_5 = arith.constant 0 : index
    %3 = vector.load %arg1[%c0_4, %c0_5] : memref<16x128xf32, #tpu.memory_space<vmem>>, vector<16x128xf32>
    %cst = arith.constant 9.900000e-01 : f32
    %4 = vector.broadcast %cst : f32 to vector<16x128xf32>
    %5 = arith.mulf %4, %0 : vector<16x128xf32>
    %6 = arith.mulf %5, %2 : vector<16x128xf32>
    %7 = arith.addf %3, %6 : vector<16x128xf32>
    %8 = arith.subf %7, %1 : vector<16x128xf32>
    %c0_6 = arith.constant 0 : index
    %c0_7 = arith.constant 0 : index
    %9 = vector.load %arg5[%c0_6, %c0_7] : memref<16x128xf32, #tpu.memory_space<vmem>>, vector<16x128xf32>
    tpu.vector_store %arg5[%c0_6, %c0_7], %8 {strides = array<i32>} : memref<16x128xf32, #tpu.memory_space<vmem>>, vector<16x128xf32>,
    %cst_8 = arith.constant 0.890999972 : f32
    %10 = vector.broadcast %cst_8 : f32 to vector<16x128xf32>
    %11 = arith.mulf %10, %0 : vector<16x128xf32>
    %c0_9 = arith.constant 0 : index
    %c0_10 = arith.constant 0 : index
    %12 = vector.load %arg6[%c0_9, %c0_10] : memref<16x128xf32, #tpu.memory_space<vmem>>, vector<16x128xf32>
    tpu.vector_store %arg6[%c0_9, %c0_10], %11 {strides = array<i32>} : memref<16x128xf32, #tpu.memory_space<vmem>>, vector<16x128xf32>,
    %cst_11 = arith.constant 0.000000e+00 : f32
    %13 = vector.broadcast %cst_11 : f32 to vector<1x128xf32>
    %c0_i32 = arith.constant 0 : i32
    %c2_i32 = arith.constant 2 : i32
    %14 = arith.addi %c0_i32, %c2_i32 : i32
    %c1_i32 = arith.constant 1 : i32
    %15 = scf.for %arg7 = %c0_i32 to %14 step %c1_i32 iter_args(%arg8 = %13) -> (vector<1x128xf32>)  : i32 {
      %c1_i32_13 = arith.constant 1 : i32
      %16 = arith.subi %c1_i32_13, %arg7 : i32
      %c8_i32 = arith.constant 8 : i32
      %17 = arith.muli %16, %c8_i32 : i32
      %18 = tpu.assume_multiple %17, 8 : i32
      %19 = arith.index_cast %18 : i32 to index
      %c0_14 = arith.constant 0 : index
      %20 = vector.load %arg5[%19, %c0_14] : memref<16x128xf32, #tpu.memory_space<vmem>>, vector<8x128xf32>
      %21 = arith.index_cast %18 : i32 to index
      %c0_15 = arith.constant 0 : index
      %22 = vector.load %arg6[%21, %c0_15] : memref<16x128xf32, #tpu.memory_space<vmem>>, vector<8x128xf32>
      %23 = vector.extract_strided_slice %20 {offsets = [7, 0], sizes = [1, 128], strides = [1, 1]} : vector<8x128xf32> to vector<1x128xf32>
      %24 = vector.extract_strided_slice %22 {offsets = [7, 0], sizes = [1, 128], strides = [1, 1]} : vector<8x128xf32> to vector<1x128xf32>
      %25 = arith.mulf %24, %arg8 : vector<1x128xf32>
      %26 = arith.addf %23, %25 : vector<1x128xf32>
      %27 = vector.extract_strided_slice %20 {offsets = [6, 0], sizes = [1, 128], strides = [1, 1]} : vector<8x128xf32> to vector<1x128xf32>
      %28 = vector.extract_strided_slice %22 {offsets = [6, 0], sizes = [1, 128], strides = [1, 1]} : vector<8x128xf32> to vector<1x128xf32>
      %29 = arith.mulf %28, %26 : vector<1x128xf32>
      %30 = arith.addf %27, %29 : vector<1x128xf32>
      %31 = vector.extract_strided_slice %20 {offsets = [5, 0], sizes = [1, 128], strides = [1, 1]} : vector<8x128xf32> to vector<1x128xf32>
      %32 = vector.extract_strided_slice %22 {offsets = [5, 0], sizes = [1, 128], strides = [1, 1]} : vector<8x128xf32> to vector<1x128xf32>
      %33 = arith.mulf %32, %30 : vector<1x128xf32>
      %34 = arith.addf %31, %33 : vector<1x128xf32>
      %35 = vector.extract_strided_slice %20 {offsets = [4, 0], sizes = [1, 128], strides = [1, 1]} : vector<8x128xf32> to vector<1x128xf32>
      %36 = vector.extract_strided_slice %22 {offsets = [4, 0], sizes = [1, 128], strides = [1, 1]} : vector<8x128xf32> to vector<1x128xf32>
      %37 = arith.mulf %36, %34 : vector<1x128xf32>
      %38 = arith.addf %35, %37 : vector<1x128xf32>
      %39 = vector.extract_strided_slice %20 {offsets = [3, 0], sizes = [1, 128], strides = [1, 1]} : vector<8x128xf32> to vector<1x128xf32>
      %40 = vector.extract_strided_slice %22 {offsets = [3, 0], sizes = [1, 128], strides = [1, 1]} : vector<8x128xf32> to vector<1x128xf32>
      %41 = arith.mulf %40, %38 : vector<1x128xf32>
      %42 = arith.addf %39, %41 : vector<1x128xf32>
      %43 = vector.extract_strided_slice %20 {offsets = [2, 0], sizes = [1, 128], strides = [1, 1]} : vector<8x128xf32> to vector<1x128xf32>
      %44 = vector.extract_strided_slice %22 {offsets = [2, 0], sizes = [1, 128], strides = [1, 1]} : vector<8x128xf32> to vector<1x128xf32>
      %45 = arith.mulf %44, %42 : vector<1x128xf32>
      %46 = arith.addf %43, %45 : vector<1x128xf32>
      %47 = vector.extract_strided_slice %20 {offsets = [1, 0], sizes = [1, 128], strides = [1, 1]} : vector<8x128xf32> to vector<1x128xf32>
      %48 = vector.extract_strided_slice %22 {offsets = [1, 0], sizes = [1, 128], strides = [1, 1]} : vector<8x128xf32> to vector<1x128xf32>
      %49 = arith.mulf %48, %46 : vector<1x128xf32>
      %50 = arith.addf %47, %49 : vector<1x128xf32>
      %51 = vector.extract_strided_slice %20 {offsets = [0, 0], sizes = [1, 128], strides = [1, 1]} : vector<8x128xf32> to vector<1x128xf32>
      %52 = vector.extract_strided_slice %22 {offsets = [0, 0], sizes = [1, 128], strides = [1, 1]} : vector<8x128xf32> to vector<1x128xf32>
      %53 = arith.mulf %52, %50 : vector<1x128xf32>
      %54 = arith.addf %51, %53 : vector<1x128xf32>
      %55 = tpu.concatenate %54, %50, %46, %42, %38, %34, %30, %26 in 0 : vector<1x128xf32>, vector<1x128xf32>, vector<1x128xf32>, vector<1x128xf32>, vector<1x128xf32>, vector<1x128xf32>, vector<1x128xf32>, vector<1x128xf32> -> vector<8x128xf32>
      %56 = arith.index_cast %18 : i32 to index
      %c0_16 = arith.constant 0 : index
      %57 = vector.load %arg4[%56, %c0_16] : memref<16x128xf32, #tpu.memory_space<vmem>>, vector<8x128xf32>
      tpu.vector_store %arg4[%56, %c0_16], %55 {strides = array<i32>} : memref<16x128xf32, #tpu.memory_space<vmem>>, vector<8x128xf32>,
      scf.yield %54 : vector<1x128xf32>
    }
    %c2_i32_12 = arith.constant 2 : i32
    return
  }
  func.func @transform_0(%arg0: i32) -> (i32, i32) {
    %c0_i32 = arith.constant 0 : i32
    %c0_i32_0 = arith.constant 0 : i32
    return %c0_i32, %arg0 : i32, i32
  }
  func.func @transform_1(%arg0: i32) -> (i32, i32) {
    %c0_i32 = arith.constant 0 : i32
    %c0_i32_0 = arith.constant 0 : i32
    return %c0_i32, %arg0 : i32, i32
  }
  func.func @transform_2(%arg0: i32) -> (i32, i32) {
    %c0_i32 = arith.constant 0 : i32
    %c0_i32_0 = arith.constant 0 : i32
    return %c0_i32, %arg0 : i32, i32
  }
  func.func @transform_3(%arg0: i32) -> (i32, i32) {
    %c0_i32 = arith.constant 0 : i32
    %c0_i32_0 = arith.constant 0 : i32
    return %c0_i32, %arg0 : i32, i32
  }
}

</mosaic_0001>

<llo_original>
// kernel: tpu_custom_call.1
$region0: #{tpu_custom_call.1}
  #allocation0 [shape = 'u32[]', space=smem, size = 0x4, offset = 0x4, fixed_abs, tag = 'smem constant byte address 0x4 - core index']
  #allocation1 [shape = 'u32[72,128]{1,0:T(1,128)}', space=vmem, size = 0x9000, scoped, tag = 'internal scratch']
  #allocation2 [shape = 'f32[16,128]{1,0:T(8,128)}', space=vmem, size = 0x2000, scoped, tag = 'scratch operand']
  #allocation3 [shape = 'f32[16,128]{1,0:T(8,128)}', space=vmem, size = 0x2000, scoped, tag = 'scratch operand']
  %s0 = inlined_call_operand.hbm [shape: f32[16,128], index: 0, kind: input, shape index: {}]
  %s1 = inlined_call_operand.hbm [shape: f32[17,128], index: 1, kind: input, shape index: {}]
  %s2 = inlined_call_operand.hbm [shape: f32[16,128], index: 2, kind: input, shape index: {}]
  %s3 = inlined_call_operand.hbm [shape: f32[16,128], index: 3, kind: output, shape index: {}]
  %s4 = sld [smem:[#allocation0]]
  $region41: #{tpu_custom_call.1} parent=0
    _
  %s6 = ssub.s32 1, %s4
  %s7 = scalar_select 0, %s6, %s4
  $region1: #{tpu_custom_call.1} parent=0
    #allocation4 [shape = 'u8[8192]{0}', space=vmem, size = 0x2000, scoped, tag = 'input window, operand 0, single buffered']
    #allocation5 [shape = 's32[1]{0}', space=sflag, size = 0x4, scoped, tag = 'scoped memory for tpu_custom_call.1']
    #allocation6 [shape = 's32[1]{0}', space=sflag, size = 0x4, scoped, tag = 'scoped memory for tpu_custom_call.1']
    #allocation7 [shape = 'u8[12288]{0}', space=vmem, size = 0x3000, scoped, tag = 'input window, operand 1, single buffered']
    #allocation8 [shape = 's32[1]{0}', space=sflag, size = 0x4, scoped, tag = 'scoped memory for tpu_custom_call.1']
    #allocation9 [shape = 'u8[8192]{0}', space=vmem, size = 0x2000, scoped, tag = 'input window, operand 2, single buffered']
    #allocation10 [shape = 'u8[8192]{0}', space=vmem, size = 0x2000, scoped, tag = 'output window, operand 0, single buffered']
    %8 = vsyncpa [#allocation5], 0
    %9 = vsyncpa [#allocation8], 0
    %10 = vsyncpa [#allocation6], 0
    // Predicated region
    $region2: #{tpu_custom_call.1} parent=1 // pred_check
      _
    $region3: #{tpu_custom_call.1} parent=1 // pred_check_branch
      %12 = sbr.rel (0) target = $region5
    $region4: #{tpu_custom_call.1} parent=1 // pred_region
      %14 = vsyncadd [#allocation5], 0
      %s15 = sshll.u32 %s0, 4
      %s16 = int_to_ptr.hbm [resolvable:$true] %s15
      %s17 = sshll.u32 [#allocation4], 4
      %s18 = int_to_ptr.vmem [resolvable:$true] %s17
      %23 = dma.hbm_to_vmem [thread:$0]  %s16, 256, %s18, [#allocation5], 128, 128, 8
    $region5: #{tpu_custom_call.1} parent=1 // pred_fallthru
      _
    // Predicated region
    $region6: #{tpu_custom_call.1} parent=1 // pred_check
      _
    $region7: #{tpu_custom_call.1} parent=1 // pred_check_branch
      %25 = sbr.rel (0) target = $region9
    $region8: #{tpu_custom_call.1} parent=1 // pred_region
      %27 = vsyncadd [#allocation8], 0
      %s28 = sshll.u32 %s1, 4
      %s29 = int_to_ptr.hbm [resolvable:$true] %s28
      %s30 = sshll.u32 [#allocation7], 4
      %s31 = int_to_ptr.vmem [resolvable:$true] %s30
      %36 = dma.hbm_to_vmem [thread:$0]  %s29, 384, %s31, [#allocation8], 128, 128, 8
    $region9: #{tpu_custom_call.1} parent=1 // pred_fallthru
      _
    // Predicated region
    $region10: #{tpu_custom_call.1} parent=1 // pred_check
      _
    $region11: #{tpu_custom_call.1} parent=1 // pred_check_branch
      %38 = sbr.rel (0) target = $region13
    $region12: #{tpu_custom_call.1} parent=1 // pred_region
      %40 = vsyncadd [#allocation8], 0
      %s41 = sshll.u32 %s2, 4
      %s42 = int_to_ptr.hbm [resolvable:$true] %s41
      %s43 = sshll.u32 [#allocation9], 4
      %s44 = int_to_ptr.vmem [resolvable:$true] %s43
      %49 = dma.hbm_to_vmem [thread:$0]  %s42, 256, %s44, [#allocation8], 128, 128, 8
    $region13: #{tpu_custom_call.1} parent=1 // pred_fallthru
      _
    // Predicated region
    $region14: #{tpu_custom_call.1} parent=1 // pred_check
      _
    $region15: #{tpu_custom_call.1} parent=1 // pred_check_branch
      %51 = sbr.rel (0) target = $region17
    $region16: #{tpu_custom_call.1} parent=1 // pred_region
      %53 = dma.done [#allocation5], 256
    $region17: #{tpu_custom_call.1} parent=1 // pred_fallthru
      _
    // Predicated region
    $region18: #{tpu_custom_call.1} parent=1 // pred_check
      _
    $region19: #{tpu_custom_call.1} parent=1 // pred_check_branch
      %55 = sbr.rel (0) target = $region21
    $region20: #{tpu_custom_call.1} parent=1 // pred_region
      %57 = dma.done [#allocation8], 384
    $region21: #{tpu_custom_call.1} parent=1 // pred_fallthru
      _
    // Predicated region
    $region22: #{tpu_custom_call.1} parent=1 // pred_check
      _
    $region23: #{tpu_custom_call.1} parent=1 // pred_check_branch
      %59 = sbr.rel (0) target = $region25
    $region24: #{tpu_custom_call.1} parent=1 // pred_region
      %61 = dma.done [#allocation8], 256
    $region25: #{tpu_custom_call.1} parent=1 // pred_fallthru
      _
    %v62 = vld [vmem:[#allocation9] sm:$0xff]
    %v63 = vld [vmem:[#allocation9 + $0x8] sm:$0xff]
    %v64 = vld [vmem:[#allocation7] sm:$0xff]
    %v65 = vld [vmem:[#allocation7 + $0x8] sm:$0xff]
    %v66 = vld [vmem:[#allocation7 + $0x1] sm:$0xff]
    %v67 = vld [vmem:[#allocation7 + $0x9] sm:$0xff]
    %v68 = vld [vmem:[#allocation4] sm:$0xff]
    %v69 = vld [vmem:[#allocation4 + $0x8] sm:$0xff]
    %v70 = vmul.f32 %v62, 0.99
    %v71 = vmul.f32 %v63, 0.99
    %v72 = vmul.f32 %v70, %v66
    %v73 = vmul.f32 %v71, %v67
    %v74 = vadd.f32 %v68, %v72
    %v75 = vadd.f32 %v69, %v73
    %v76 = vsub.f32 %v74, %v64
    %v77 = vsub.f32 %v75, %v65
    %78 = vst [vmem:[#allocation2] sm:$0xff] %v76
    %79 = vst [vmem:[#allocation2 + $0x8] sm:$0xff] %v77
    %v80 = vmul.f32 %v62, 0.891
    %v81 = vmul.f32 %v63, 0.891
    %82 = vst [vmem:[#allocation3] sm:$0xff] %v80
    %83 = vst [vmem:[#allocation3 + $0x8] sm:$0xff] %v81
    loop: start=0, step=1, limit=2
    $region26: #{tpu_custom_call.1} parent=1 // loop_pre_header
      _
    $region27: #{tpu_custom_call.1} parent=1 // loop_header
      %s85 = sphi 0, %s89
      %p86 = scmp.ge.s32.totalorder %s85, 2
      %v90 = vphi 0.0, %v136
    $region28: #{tpu_custom_call.1} parent=1 // loop_header_branch
      %88 = sbr.rel (%p86) target = $region32
    $region29: #{tpu_custom_call.1} parent=1 // loop_body
      %s91 = ssub.s32 1, %s85
      %s92 = smul.u32 %s91, 8
      %s93 = scalar_lea.vmem [#allocation2], %s92
      %v94 = vld [vmem:[%s93] sm:$0xff]
      %s95 = scalar_lea.vmem [#allocation3], %s92
      %v96 = vld [vmem:[%s95] sm:$0xff]
      %v98 = vrot.slane %v90, 1
      %v100 = vmul.f32 %v96, %v98
      %v101 = vadd.f32 %v94, %v100
      %v103 = vrot.slane %v101, 1
      %v105 = vmul.f32 %v96, %v103
      %v106 = vadd.f32 %v94, %v105
      %v108 = vrot.slane %v106, 1
      %v110 = vmul.f32 %v96, %v108
      %v111 = vadd.f32 %v94, %v110
      %v113 = vrot.slane %v111, 1
      %v115 = vmul.f32 %v96, %v113
      %v116 = vadd.f32 %v94, %v115
      %v118 = vrot.slane %v116, 1
      %v120 = vmul.f32 %v96, %v118
      %v121 = vadd.f32 %v94, %v120
      %v123 = vrot.slane %v121, 1
      %v125 = vmul.f32 %v96, %v123
      %v126 = vadd.f32 %v94, %v125
      %v128 = vrot.slane %v126, 1
      %v130 = vmul.f32 %v96, %v128
      %v131 = vadd.f32 %v94, %v130
      %v133 = vrot.slane %v131, 1
      %v135 = vmul.f32 %v96, %v133
      %v136 = vadd.f32 %v94, %v135
      %vm137 = vcmask 1040384
      %v138 = vsel %vm137, %v136, %v131
      %vm139 = vcmask 1041408
      %v140 = vsel %vm139, %v138, %v126
      %vm141 = vcmask 1042432
      %v142 = vsel %vm141, %v140, %v121
      %vm143 = vcmask 1043456
      %v144 = vsel %vm143, %v142, %v116
      %vm145 = vcmask 1044480
      %v146 = vsel %vm145, %v144, %v111
      %vm147 = vcmask 1045504
      %v148 = vsel %vm147, %v146, %v106
      %vm149 = vcmask 1046528
      %v150 = vsel %vm149, %v148, %v101
      %s151 = scalar_lea.vmem [#allocation10], %s92
      %152 = vst [vmem:[%s151] sm:$0xff] %v150
    $region30: #{tpu_custom_call.1} parent=1 // loop_footer
      %s89 = sadd.s32 1, %s85
    $region31: #{tpu_custom_call.1} parent=1 // loop_footer_branch
      %84 = sbr.rel target = $region27
    $region32: #{tpu_custom_call.1} parent=1 // loop_exit
      _
    // Predicated region
    $region33: #{tpu_custom_call.1} parent=1 // pred_check
      _
    $region34: #{tpu_custom_call.1} parent=1 // pred_check_branch
      %154 = sbr.rel (0) target = $region36
    $region35: #{tpu_custom_call.1} parent=1 // pred_region
      %156 = vsyncadd [#allocation6], 0
      %s157 = sshll.u32 [#allocation10], 4
      %s158 = int_to_ptr.vmem [resolvable:$true] %s157
      %s159 = sshll.u32 %s3, 4
      %s160 = int_to_ptr.hbm [resolvable:$true] %s159
      %165 = dma.vmem_to_hbm [thread:$0]  %s158, 256, %s160, [#allocation6], 128, 128, 8
    $region36: #{tpu_custom_call.1} parent=1 // pred_fallthru
      _
    // Predicated region
    $region37: #{tpu_custom_call.1} parent=1 // pred_check
      _
    $region38: #{tpu_custom_call.1} parent=1 // pred_check_branch
      %167 = sbr.rel (0) target = $region40
    $region39: #{tpu_custom_call.1} parent=1 // pred_region
      %169 = dma.done [#allocation6], 256
    $region40: #{tpu_custom_call.1} parent=1 // pred_fallthru
      _
    %170 = vsyncpa [#allocation5], 1
    %171 = vsyncpa [#allocation8], 1
    %172 = vsyncpa [#allocation6], 1

</llo_original>
